<compile_context>
chip_gen: v6e
topology: v6e:2x2x1
jax: 0.10.0
libtpu: 0.0.40
codegen_flags: <defaults>
</compile_context>

<pallas_src>
import functools

import jax
import jax.numpy as jnp
from jax import lax
from jax.experimental import pallas as pl
from jax.experimental.pallas import tpu as pltpu


def self_attention_kernel(x_ref, w1_ref, b1_ref, w2_ref, out_ref, wts_ref):
    # x_ref:   (R, p*H)    input dtype; R = TB*G packed rows, each row = p consecutive tokens
    # w1_ref:  (p*H, p*D)  bf16 block-diagonal Linear(H, 64) weight
    # b1_ref:  (1, p*D)    f32 Linear(H, 64) bias, tiled p times
    # w2_ref:  (1, p*D)    f32 Linear(64, 1) weight row, tiled p times (its bias b2 is
    #                      dropped: softmax is shift invariant -> no effect on outputs)
    # out_ref: (TB, H)     pooled output, written directly in the final (input) dtype
    # wts_ref: (R, p)      softmax weights in packed-row layout, always f32
    TB, H = out_ref.shape
    R, p = wts_ref.shape
    G = R // TB                          # token groups per batch element (T = G * p)
    D = w1_ref.shape[1] // p

    xv = x_ref[...]                                                   # (R, p*H)

    # ---- correlation MLP --------------------------------------------------------------
    # Linear(H, 64) for p tokens at once: one packed MXU matmul (bf16 operands, f32 acc).
    h = jnp.dot(xv.astype(jnp.bfloat16), w1_ref[...],
                preferred_element_type=jnp.float32)                   # (R, p*D)
    h = jnp.maximum(h + b1_ref[...], 0.0)                             # bias + ReLU (VPU)

    # Linear(64, 1): lane-dense VPU multiply + one lane reduction per token slot
    # (an N=1 MXU matmul would waste the array).
    hw = h * w2_ref[...]                                              # (R, p*D)
    lane = lax.broadcasted_iota(jnp.int32, (1, p), 1)
    s = jnp.zeros((R, p), jnp.float32)
    for j in range(p):
        s_j = jnp.sum(hw[:, j * D:(j + 1) * D], axis=-1, keepdims=True)   # (R, 1)
        s = s + jnp.where(lane == j, s_j, 0.0)                             # scatter to lane j

    # ---- softmax over the T = G*p tokens of each batch element (all f32) ---------------
    s3 = s.reshape(TB, G, p)
    m = jnp.max(jnp.max(s3, axis=-1, keepdims=True), axis=1, keepdims=True)   # (TB,1,1)
    e = jnp.exp(s3 - m)
    z = jnp.sum(jnp.sum(e, axis=-1, keepdims=True), axis=1, keepdims=True)    # (TB,1,1)
    w3 = e / z                                                                # (TB, G, p)
    w = w3.reshape(R, p)
    wts_ref[...] = w.astype(wts_ref.dtype)                                    # f32 weights

    # ---- attention pooling in original input precision (f32 accumulation) --------------
    # out[b] = sum_t w[b, t] * x[b, t, :]  -- short unrolled MAC loop, no slab copy.
    xf = xv.astype(jnp.float32)
    acc = w[:, 0:1] * xf[:, 0:H]
    for j in range(1, p):
        acc = acc + w[:, j:j + 1] * xf[:, j * H:(j + 1) * H]          # (R, H)
    if G > 1:
        acc = jnp.sum(acc.reshape(TB, G, H), axis=1)                  # fold token groups
    out_ref[...] = acc.astype(out_ref.dtype)


def _packing_factor(T, H):
    """Tokens packed per MXU row: the largest divisor of T with packed K = p*H <= 128."""
    pmax = max(1, 128 // max(1, H))
    p = 1
    for cand in range(1, min(T, pmax) + 1):
        if T % cand == 0:
            p = cand
    return p


def _batch_tile(B, T, H, D, itemsize, tb):
    """Batch tile: big enough to amortize grid-step overhead, small enough for v5e's
    16 MiB scoped default / v7x's 64 MiB physical VMEM, preferring an exact divisor of B
    (no ragged last block and no jnp.pad of x)."""
    per_elem = 2 * T * H * itemsize + 5 * T * D * 4 + 2 * (H + T) * 4     # bytes / element
    tb_vmem = max(8, int((20 << 20) // per_elem))
    if tb is None:
        tb = max(8, (2 << 20) // max(1, T * H * itemsize))               # ~2 MiB x slab
    tb = int(min(tb, tb_vmem, B))
    if B <= 8:
        return B
    tb = max(8, (tb // 8) * 8)
    if B % tb:
        for cand in range(tb, 7, -8):                                    # exact divisor
            if B % cand == 0:
                return cand
    return tb   # no multiple-of-8 divisor: Pallas masks the ragged last block


@functools.partial(jax.jit, static_argnames=("tb",))
def self_attention(x, w1, b1, w2, b2, *, tb=None):
    """x: (B, T, H).  w1: (H, 64), b1: (1, 64), w2: (64, 1), b2: (1, 1).

    Returns (out (B, H) in x.dtype, weights (B, T) in float32).
    """
    del b2  # softmax(s + c) == softmax(s): b2 provably cannot affect either output
    B, T, H = x.shape
    D = w1.shape[-1]
    itemsize = jnp.dtype(x.dtype).itemsize

    p = _packing_factor(T, H)
    G = T // p

    # Pack p consecutive tokens per row (free reshape of the contiguous HBM array).
    xr = x.reshape(B * G, p * H)

    # Block-diagonal / tiled small weights (a few hundred KiB at most, stay VMEM-resident).
    w1_blk = jnp.kron(jnp.eye(p, dtype=w1.dtype), w1).astype(jnp.bfloat16)   # (p*H, p*D)
    b1_t = jnp.tile(b1.reshape(1, D).astype(jnp.float32), (1, p))            # (1, p*D)
    w2_t = jnp.tile(w2.reshape(1, D).astype(jnp.float32), (1, p))            # (1, p*D)

    tb = _batch_tile(B, T, H, D, itemsize, tb)
    grid = (pl.cdiv(B, tb),)

    # Explicit scoped-VMEM budget from the per-step footprint (double-buffered x and
    # output blocks, resident weights, f32 activation temporaries).
    est = (2 * tb * G * p * H * itemsize
           + 2 * (tb * H * itemsize + tb * G * p * 4)
           + (p * H) * (p * D) * 2 + 2 * p * D * 4
           + 5 * tb * G * p * D * 4)
    vmem_limit = int(min(48 << 20, max(16 << 20, 2 * est)))

    out, wts = pl.pallas_call(
        self_attention_kernel,
        out_shape=(
            jax.ShapeDtypeStruct((B, H), x.dtype),             # final dtype written in-kernel
            jax.ShapeDtypeStruct((B * G, p), jnp.float32),     # weights always f32
        ),
        grid=grid,
        in_specs=[
            pl.BlockSpec((tb * G, p * H), lambda i: (i, 0)),   # lane-dense x slab
            pl.BlockSpec((p * H, p * D), lambda i: (0, 0)),    # small weights, resident
            pl.BlockSpec((1, p * D), lambda i: (0, 0)),
            pl.BlockSpec((1, p * D), lambda i: (0, 0)),
        ],
        out_specs=(
            pl.BlockSpec((tb, H), lambda i: (i, 0)),
            pl.BlockSpec((tb * G, p), lambda i: (i, 0)),
        ),
        compiler_params=pltpu.CompilerParams(
            dimension_semantics=("parallel",),                 # both TensorCores on v7x
            vmem_limit_bytes=vmem_limit),
    )(xr, w1_blk, b1_t, w2_t)

    # packed-row weights -> (B, T); free reshape, weights stay float32
    return out, wts.reshape(B, T)


def reference_f32(x, w1, b1, w2, b2):
    # Full-f32 mirror of the PyTorch forward (keeps the mathematically redundant b2).
    h = jnp.maximum(jnp.einsum("bth,hd->btd", x, w1) + b1, 0.0)
    a = jnp.einsum("btd,do->bto", h, w2) + b2                 # (B, T, 1)
    weights = jax.nn.softmax(a[..., 0], axis=1)               # (B, T)
    out = jnp.sum(x * weights[..., None], axis=1)             # (B, H)
    return out, weights


def reference_mirrored(x, w1, b1, w2):
    # Mirrors the kernel numerics: bf16 MXU operands with f32 accumulation for the
    # scores, f32 softmax, and original-precision x on the pooling path; b2 omitted
    # (softmax shift invariance).
    h = jnp.einsum("bth,hd->btd", x.astype(jnp.bfloat16), w1.astype(jnp.bfloat16),
                   preferred_element_type=jnp.float32)
    h = jnp.maximum(h + b1.reshape(1, 1, -1).astype(jnp.float32), 0.0)
    scores = jnp.sum(h * w2.reshape(1, 1, -1).astype(jnp.float32), axis=-1)   # (B, T)
    weights = jax.nn.softmax(scores, axis=1)
    out = jnp.sum(x.astype(jnp.float32) * weights[..., None], axis=1)
    return out, weights


if __name__ == "__main__":
    B, T, H, D = 16, 8, 32, 64   # small, but two batch tiles (tb=8) so the grid is exercised

    key = jax.random.PRNGKey(0)
    kx, kw1, kb1, kw2, kb2 = jax.random.split(key, 5)

    x = jax.random.normal(kx, (B, T, H), dtype=jnp.float32)
    # nn.Linear(H, 64): weight (64, H), bias (64,)  -> stored transposed as (H, 64)
    w1 = jax.random.normal(kw1, (H, D), dtype=jnp.float32) * 0.1
    b1 = jax.random.normal(kb1, (1, D), dtype=jnp.float32) * 0.1
    # nn.Linear(64, 1): weight (1, 64), bias (1,)   -> stored transposed as (64, 1)
    w2 = jax.random.normal(kw2, (D, 1), dtype=jnp.float32) * 0.1
    b2 = jax.random.normal(kb2, (1, 1), dtype=jnp.float32) * 0.1

    out, wts = self_attention(x, w1, b1, w2, b2, tb=8)        # grid of 2 batch tiles
    jax.block_until_ready((out, wts))

    # 1) tight check vs a reference mirroring the kernel's numerics
    out_m, wts_m = reference_mirrored(x, w1, b1, w2)
    assert jnp.allclose(out, out_m, atol=1e-4, rtol=1e-4), "out mismatch (mirrored ref)"
    assert jnp.allclose(wts, wts_m, atol=1e-4, rtol=1e-4), "weights mismatch (mirrored ref)"

    # 2) semantic check vs the exact f32 module forward (score bf16-rounding tolerance)
    out_f, wts_f = reference_f32(x, w1, b1, w2, b2)
    assert jnp.allclose(out, out_f, atol=2e-2, rtol=0.0), "out mismatch (f32 ref)"
    assert jnp.allclose(wts, wts_f, atol=2e-2, rtol=0.0), "weights mismatch (f32 ref)"

    # weights are a valid f32 softmax over the sequence axis; out keeps x.dtype
    assert out.dtype == x.dtype and wts.dtype == jnp.float32
    assert jnp.allclose(jnp.sum(wts, axis=1), 1.0, atol=1e-5)

    print("KERNEL_OK")
</pallas_src>

<mosaic_0001>
module attributes {stable_mosaic.version = 11 : i64} {
  func.func @self_attention_kernel(%arg0: i32, %arg1: memref<16x128xf32, #tpu.memory_space<vmem>>, %arg2: memref<128x256xbf16, #tpu.memory_space<vmem>>, %arg3: memref<1x256xf32, #tpu.memory_space<vmem>>, %arg4: memref<1x256xf32, #tpu.memory_space<vmem>>, %arg5: memref<8x32xf32, #tpu.memory_space<vmem>>, %arg6: memref<16x4xf32, #tpu.memory_space<vmem>>) attributes {dimension_semantics = [#tpu.dimension_semantics<parallel>], iteration_bounds = array<i64: 2>, scalar_prefetch = 0 : i64, scratch_operands = 0 : i64, tpu.core_type = #tpu.core_type<tc>, window_params = [{transform_indices = @transform_0, window_bounds = array<i64: 16, 128>}, {pipeline_mode = #tpu.pipeline_mode<synchronous>, transform_indices = @transform_1, window_bounds = array<i64: 128, 256>}, {pipeline_mode = #tpu.pipeline_mode<synchronous>, transform_indices = @transform_2, window_bounds = array<i64: 1, 256>}, {pipeline_mode = #tpu.pipeline_mode<synchronous>, transform_indices = @transform_3, window_bounds = array<i64: 1, 256>}, {transform_indices = @transform_4, window_bounds = array<i64: 8, 32>}, {transform_indices = @transform_5, window_bounds = array<i64: 16, 4>}]} {
    %c0 = arith.constant 0 : index
    %c0_0 = arith.constant 0 : index
    %0 = vector.load %arg1[%c0, %c0_0] : memref<16x128xf32, #tpu.memory_space<vmem>>, vector<16x128xf32>
    %1 = arith.truncf %0 : vector<16x128xf32> to vector<16x128xbf16>
    %c0_1 = arith.constant 0 : index
    %c0_2 = arith.constant 0 : index
    %2 = vector.load %arg2[%c0_1, %c0_2] : memref<128x256xbf16, #tpu.memory_space<vmem>>, vector<128x256xbf16>
    %cst = arith.constant dense<0.000000e+00> : vector<16x256xf32>
    %3 = tpu.matmul %1, %2, %cst {dimension_numbers = #tpu.dot_dimension_numbers<[1], [0], [0], [1], [0, 0, 1, 1], [], []>} : vector<16x128xbf16>, vector<128x256xbf16>, vector<16x256xf32> -> vector<16x256xf32>
    %c0_3 = arith.constant 0 : index
    %c0_4 = arith.constant 0 : index
    %4 = vector.load %arg3[%c0_3, %c0_4] : memref<1x256xf32, #tpu.memory_space<vmem>>, vector<1x256xf32>
    %5 = vector.broadcast %4 : vector<1x256xf32> to vector<16x256xf32>
    %6 = arith.addf %3, %5 : vector<16x256xf32>
    %cst_5 = arith.constant 0.000000e+00 : f32
    %7 = vector.broadcast %cst_5 : f32 to vector<16x256xf32>
    %8 = arith.maximumf %6, %7 : vector<16x256xf32>
    %c0_6 = arith.constant 0 : index
    %c0_7 = arith.constant 0 : index
    %9 = vector.load %arg4[%c0_6, %c0_7] : memref<1x256xf32, #tpu.memory_space<vmem>>, vector<1x256xf32>
    %10 = vector.broadcast %9 : vector<1x256xf32> to vector<16x256xf32>
    %11 = arith.mulf %8, %10 : vector<16x256xf32>
    %12 = tpu.iota {dimensions = array<i32: 1>} : vector<1x4xi32>
    %cst_8 = arith.constant 0.000000e+00 : f32
    %13 = vector.broadcast %cst_8 : f32 to vector<16x4xf32>
    %14 = vector.extract_strided_slice %11 {offsets = [0, 0], sizes = [16, 64], strides = [1, 1]} : vector<16x256xf32> to vector<16x64xf32>
    %cst_9 = arith.constant dense<0.000000e+00> : vector<16xf32>
    %15 = vector.multi_reduction <add>, %14, %cst_9 [1] : vector<16x64xf32> to vector<16xf32>
    %16 = vector.shape_cast %15 : vector<16xf32> to vector<16x1xf32>
    %c0_i32 = arith.constant 0 : i32
    %17 = vector.broadcast %c0_i32 : i32 to vector<1x4xi32>
    %18 = arith.cmpi eq, %12, %17 : vector<1x4xi32>
    %cst_10 = arith.constant 0.000000e+00 : f32
    %19 = vector.shape_cast %18 : vector<1x4xi1> to vector<1x4xi1>
    %20 = vector.broadcast %19 : vector<1x4xi1> to vector<16x4xi1>
    %21 = vector.shape_cast %16 : vector<16x1xf32> to vector<16x1xf32>
    %22 = vector.broadcast %21 : vector<16x1xf32> to vector<16x4xf32>
    %23 = vector.broadcast %cst_10 : f32 to vector<16x4xf32>
    %24 = arith.select %20, %22, %23 : vector<16x4xi1>, vector<16x4xf32>
    %25 = arith.addf %13, %24 : vector<16x4xf32>
    %26 = vector.extract_strided_slice %11 {offsets = [0, 64], sizes = [16, 64], strides = [1, 1]} : vector<16x256xf32> to vector<16x64xf32>
    %cst_11 = arith.constant dense<0.000000e+00> : vector<16xf32>
    %27 = vector.multi_reduction <add>, %26, %cst_11 [1] : vector<16x64xf32> to vector<16xf32>
    %28 = vector.shape_cast %27 : vector<16xf32> to vector<16x1xf32>
    %c1_i32 = arith.constant 1 : i32
    %29 = vector.broadcast %c1_i32 : i32 to vector<1x4xi32>
    %30 = arith.cmpi eq, %12, %29 : vector<1x4xi32>
    %cst_12 = arith.constant 0.000000e+00 : f32
    %31 = vector.shape_cast %30 : vector<1x4xi1> to vector<1x4xi1>
    %32 = vector.broadcast %31 : vector<1x4xi1> to vector<16x4xi1>
    %33 = vector.shape_cast %28 : vector<16x1xf32> to vector<16x1xf32>
    %34 = vector.broadcast %33 : vector<16x1xf32> to vector<16x4xf32>
    %35 = vector.broadcast %cst_12 : f32 to vector<16x4xf32>
    %36 = arith.select %32, %34, %35 : vector<16x4xi1>, vector<16x4xf32>
    %37 = arith.addf %25, %36 : vector<16x4xf32>
    %38 = vector.extract_strided_slice %11 {offsets = [0, 128], sizes = [16, 64], strides = [1, 1]} : vector<16x256xf32> to vector<16x64xf32>
    %cst_13 = arith.constant dense<0.000000e+00> : vector<16xf32>
    %39 = vector.multi_reduction <add>, %38, %cst_13 [1] : vector<16x64xf32> to vector<16xf32>
    %40 = vector.shape_cast %39 : vector<16xf32> to vector<16x1xf32>
    %c2_i32 = arith.constant 2 : i32
    %41 = vector.broadcast %c2_i32 : i32 to vector<1x4xi32>
    %42 = arith.cmpi eq, %12, %41 : vector<1x4xi32>
    %cst_14 = arith.constant 0.000000e+00 : f32
    %43 = vector.shape_cast %42 : vector<1x4xi1> to vector<1x4xi1>
    %44 = vector.broadcast %43 : vector<1x4xi1> to vector<16x4xi1>
    %45 = vector.shape_cast %40 : vector<16x1xf32> to vector<16x1xf32>
    %46 = vector.broadcast %45 : vector<16x1xf32> to vector<16x4xf32>
    %47 = vector.broadcast %cst_14 : f32 to vector<16x4xf32>
    %48 = arith.select %44, %46, %47 : vector<16x4xi1>, vector<16x4xf32>
    %49 = arith.addf %37, %48 : vector<16x4xf32>
    %50 = vector.extract_strided_slice %11 {offsets = [0, 192], sizes = [16, 64], strides = [1, 1]} : vector<16x256xf32> to vector<16x64xf32>
    %cst_15 = arith.constant dense<0.000000e+00> : vector<16xf32>
    %51 = vector.multi_reduction <add>, %50, %cst_15 [1] : vector<16x64xf32> to vector<16xf32>
    %52 = vector.shape_cast %51 : vector<16xf32> to vector<16x1xf32>
    %c3_i32 = arith.constant 3 : i32
    %53 = vector.broadcast %c3_i32 : i32 to vector<1x4xi32>
    %54 = arith.cmpi eq, %12, %53 : vector<1x4xi32>
    %cst_16 = arith.constant 0.000000e+00 : f32
    %55 = vector.shape_cast %54 : vector<1x4xi1> to vector<1x4xi1>
    %56 = vector.broadcast %55 : vector<1x4xi1> to vector<16x4xi1>
    %57 = vector.shape_cast %52 : vector<16x1xf32> to vector<16x1xf32>
    %58 = vector.broadcast %57 : vector<16x1xf32> to vector<16x4xf32>
    %59 = vector.broadcast %cst_16 : f32 to vector<16x4xf32>
    %60 = arith.select %56, %58, %59 : vector<16x4xi1>, vector<16x4xf32>
    %61 = arith.addf %49, %60 : vector<16x4xf32>
    %62 = vector.shape_cast %61 : vector<16x4xf32> to vector<8x2x4xf32>
    %cst_17 = arith.constant dense<0xFF800000> : vector<8x2xf32>
    %63 = vector.multi_reduction <maximumf>, %62, %cst_17 [2] : vector<8x2x4xf32> to vector<8x2xf32>
    %64 = vector.shape_cast %63 : vector<8x2xf32> to vector<8x2x1xf32>
    %cst_18 = arith.constant dense<0xFF800000> : vector<8x1xf32>
    %65 = vector.multi_reduction <maximumf>, %64, %cst_18 [1] : vector<8x2x1xf32> to vector<8x1xf32>
    %66 = vector.shape_cast %65 : vector<8x1xf32> to vector<8x1x1xf32>
    %67 = vector.broadcast %66 : vector<8x1x1xf32> to vector<8x2x4xf32>
    %68 = arith.subf %62, %67 : vector<8x2x4xf32>
    %69 = math.exp %68 : vector<8x2x4xf32>
    %cst_19 = arith.constant dense<0.000000e+00> : vector<8x2xf32>
    %70 = vector.multi_reduction <add>, %69, %cst_19 [2] : vector<8x2x4xf32> to vector<8x2xf32>
    %71 = vector.shape_cast %70 : vector<8x2xf32> to vector<8x2x1xf32>
    %cst_20 = arith.constant dense<0.000000e+00> : vector<8x1xf32>
    %72 = vector.multi_reduction <add>, %71, %cst_20 [1] : vector<8x2x1xf32> to vector<8x1xf32>
    %73 = vector.shape_cast %72 : vector<8x1xf32> to vector<8x1x1xf32>
    %74 = vector.broadcast %73 : vector<8x1x1xf32> to vector<8x2x4xf32>
    %75 = arith.divf %69, %74 : vector<8x2x4xf32>
    %76 = vector.shape_cast %75 : vector<8x2x4xf32> to vector<16x4xf32>
    %c0_21 = arith.constant 0 : index
    %c0_22 = arith.constant 0 : index
    %77 = vector.load %arg6[%c0_21, %c0_22] : memref<16x4xf32, #tpu.memory_space<vmem>>, vector<16x4xf32>
    tpu.vector_store %arg6[%c0_21, %c0_22], %76 {strides = array<i32>} : memref<16x4xf32, #tpu.memory_space<vmem>>, vector<16x4xf32>,
    %78 = vector.extract_strided_slice %76 {offsets = [0, 0], sizes = [16, 1], strides = [1, 1]} : vector<16x4xf32> to vector<16x1xf32>
    %79 = vector.extract_strided_slice %0 {offsets = [0, 0], sizes = [16, 32], strides = [1, 1]} : vector<16x128xf32> to vector<16x32xf32>
    %80 = vector.broadcast %78 : vector<16x1xf32> to vector<16x32xf32>
    %81 = arith.mulf %80, %79 : vector<16x32xf32>
    %82 = vector.extract_strided_slice %76 {offsets = [0, 1], sizes = [16, 1], strides = [1, 1]} : vector<16x4xf32> to vector<16x1xf32>
    %83 = vector.extract_strided_slice %0 {offsets = [0, 32], sizes = [16, 32], strides = [1, 1]} : vector<16x128xf32> to vector<16x32xf32>
    %84 = vector.broadcast %82 : vector<16x1xf32> to vector<16x32xf32>
    %85 = arith.mulf %84, %83 : vector<16x32xf32>
    %86 = arith.addf %81, %85 : vector<16x32xf32>
    %87 = vector.extract_strided_slice %76 {offsets = [0, 2], sizes = [16, 1], strides = [1, 1]} : vector<16x4xf32> to vector<16x1xf32>
    %88 = vector.extract_strided_slice %0 {offsets = [0, 64], sizes = [16, 32], strides = [1, 1]} : vector<16x128xf32> to vector<16x32xf32>
    %89 = vector.broadcast %87 : vector<16x1xf32> to vector<16x32xf32>
    %90 = arith.mulf %89, %88 : vector<16x32xf32>
    %91 = arith.addf %86, %90 : vector<16x32xf32>
    %92 = vector.extract_strided_slice %76 {offsets = [0, 3], sizes = [16, 1], strides = [1, 1]} : vector<16x4xf32> to vector<16x1xf32>
    %93 = vector.extract_strided_slice %0 {offsets = [0, 96], sizes = [16, 32], strides = [1, 1]} : vector<16x128xf32> to vector<16x32xf32>
    %94 = vector.broadcast %92 : vector<16x1xf32> to vector<16x32xf32>
    %95 = arith.mulf %94, %93 : vector<16x32xf32>
    %96 = arith.addf %91, %95 : vector<16x32xf32>
    %97 = vector.shape_cast %96 : vector<16x32xf32> to vector<8x2x32xf32>
    %cst_23 = arith.constant dense<0.000000e+00> : vector<8x32xf32>
    %98 = vector.multi_reduction <add>, %97, %cst_23 [1] : vector<8x2x32xf32> to vector<8x32xf32>
    %c0_24 = arith.constant 0 : index
    %c0_25 = arith.constant 0 : index
    %99 = vector.load %arg5[%c0_24, %c0_25] : memref<8x32xf32, #tpu.memory_space<vmem>>, vector<8x32xf32>
    tpu.vector_store %arg5[%c0_24, %c0_25], %98 {strides = array<i32>} : memref<8x32xf32, #tpu.memory_space<vmem>>, vector<8x32xf32>,
    return
  }
  func.func @transform_0(%arg0: i32) -> (i32, i32) {
    %c0_i32 = arith.constant 0 : i32
    %c0_i32_0 = arith.constant 0 : i32
    return %arg0, %c0_i32 : i32, i32
  }
  func.func @transform_1(%arg0: i32) -> (i32, i32) {
    %c0_i32 = arith.constant 0 : i32
    %c0_i32_0 = arith.constant 0 : i32
    %c0_i32_1 = arith.constant 0 : i32
    return %c0_i32, %c0_i32_0 : i32, i32
  }
  func.func @transform_2(%arg0: i32) -> (i32, i32) {
    %c0_i32 = arith.constant 0 : i32
    %c0_i32_0 = arith.constant 0 : i32
    %c0_i32_1 = arith.constant 0 : i32
    return %c0_i32, %c0_i32_0 : i32, i32
  }
  func.func @transform_3(%arg0: i32) -> (i32, i32) {
    %c0_i32 = arith.constant 0 : i32
    %c0_i32_0 = arith.constant 0 : i32
    %c0_i32_1 = arith.constant 0 : i32
    return %c0_i32, %c0_i32_0 : i32, i32
  }
  func.func @transform_4(%arg0: i32) -> (i32, i32) {
    %c0_i32 = arith.constant 0 : i32
    %c0_i32_0 = arith.constant 0 : i32
    return %arg0, %c0_i32 : i32, i32
  }
  func.func @transform_5(%arg0: i32) -> (i32, i32) {
    %c0_i32 = arith.constant 0 : i32
    %c0_i32_0 = arith.constant 0 : i32
    return %arg0, %c0_i32 : i32, i32
  }
}

</mosaic_0001>

<llo_original>
// kernel: self_attention.1
$region0: #{self_attention.1}
  #allocation0 [shape = 'u32[]', space=smem, size = 0x4, offset = 0x4, fixed_abs, tag = 'smem constant byte address 0x4 - core index']
  #allocation1 [shape = 'u32[144,128]{1,0:T(1,128)}', space=vmem, size = 0x12000, scoped, tag = 'internal scratch']
  %s0 = inlined_call_operand.vmem [shape: f32[32,128], index: 0, kind: input, shape index: {}]
  %s1 = inlined_call_operand.vmem [shape: bf16[128,256], index: 1, kind: input, shape index: {}]
  %s2 = inlined_call_operand.vmem [shape: f32[1,256], index: 2, kind: input, shape index: {}]
  %s3 = inlined_call_operand.vmem [shape: f32[1,256], index: 3, kind: input, shape index: {}]
  %s4 = inlined_call_operand.hbm [shape: f32[16,32], index: 4, kind: output, shape index: {0}]
  %s5 = inlined_call_operand.vmem [shape: f32[32,4], index: 5, kind: output, shape index: {1}]
  %6 = xla_tuple %s4, %s5
  %s7 = sld [smem:[#allocation0]]
  $region57: #{self_attention.1} parent=0
    _
  %s9 = ssub.s32 1, %s7
  %s10 = scalar_select 0, %s9, %s7
  $region1: #{self_attention.1} parent=0
    #allocation2 [shape = 'u8[8192]{0}', space=vmem, size = 0x2000, scoped, tag = 'output window, operand 0']
    #allocation3 [shape = 's32[2]{0}', space=sflag, size = 0x8, scoped, tag = 'scoped memory for self_attention.1']
    %11 = vsyncpa [#allocation3], 0
    %s12 = scalar_lea.sflag [#allocation3], 1
    %13 = vsyncpa %s12, 0
    loop: start=0, step=1, limit=4
    $region2: #{self_attention.1} parent=1 // loop_pre_header
      _
    $region3: #{self_attention.1} parent=1 // loop_header
      %s15 = sphi 0, %s19
      %p16 = scmp.ge.s32.totalorder %s15, 4
      %s25 = sphi 0, %s27
      %s28 = sphi 0, %s25
      %s29 = sphi 0, %s28
      %s45 = sphi 0, %s29
      %s49 = sphi 0, %s49
      %s51 = sphi 0, %s49
      %s52 = sphi 0, %s51
      %s66 = sphi 0, %s52
      %s70 = sphi 0, %s70
      %s72 = sphi 0, %s70
      %s73 = sphi 0, %s72
      %s87 = sphi 0, %s73
      %s91 = sphi 0, %s91
      %s93 = sphi 0, %s91
      %s94 = sphi 0, %s93
      %s108 = sphi 0, %s94
      %s114 = sphi 0, %s116
      %s117 = sphi 0, %s114
      %s118 = sphi 0, %s117
      %s134 = sphi 0, %s118
      %s140 = sphi 0, %s142
      %s143 = sphi 0, %s140
      %s144 = sphi 0, %s143
      %s160 = sphi 0, %s144
    $region4: #{self_attention.1} parent=1 // loop_header_branch
      %18 = sbr.rel (%p16) target = $region8
    $region5: #{self_attention.1} parent=1 // loop_body
      %s20 = ssub.s32 %s15, 1
      %s21 = ssub.s32 %s15, 2
      %s22 = sadd.s32 %s15, 1
      %s23 = ssub.s32 %s15, %s22
      %p24 = scmp.eq.s32.totalorder %s23, 0
      %s26 = sadd.s32 %s25, 1
      %s27 = scalar_select %p24, %s25, %s26
      %p30 = pneg %p24
      %p31 = scmp.eq.s32.totalorder %s15, 1
      %p32 = por %p30, %p31
      %p33 = scmp.ne.s32.totalorder %s25, %s28
      %p34 = scmp.eq.s32.totalorder %s15, 0
      %p35 = por %p33, %p34
      %p36 = scmp.ne.s32.totalorder %s25, %s28
      %p37 = scmp.eq.s32.totalorder %s20, 1
      %p38 = por %p36, %p37
      %p39 = scmp.ne.s32.totalorder %s28, %s29
      %p40 = scmp.eq.s32.totalorder %s20, 0
      %p41 = por %p39, %p40
      %p42 = scmp.ne.s32.totalorder %s28, %s29
      %p43 = scmp.eq.s32.totalorder %s21, 1
      %p44 = por %p42, %p43
      %p46 = scmp.ne.s32.totalorder %s29, %s45
      %p47 = scmp.eq.s32.totalorder %s21, 0
      %p48 = por %p46, %p47
      %s50 = sadd.s32 %s49, 1
      %p53 = scmp.eq.s32.totalorder %s15, 1
      %p54 = scmp.ne.s32.totalorder %s49, %s51
      %p55 = scmp.eq.s32.totalorder %s15, 0
      %p56 = por %p54, %p55
      %p57 = scmp.ne.s32.totalorder %s49, %s51
      %p58 = scmp.eq.s32.totalorder %s20, 1
      %p59 = por %p57, %p58
      %p60 = scmp.ne.s32.totalorder %s51, %s52
      %p61 = scmp.eq.s32.totalorder %s20, 0
      %p62 = por %p60, %p61
      %p63 = scmp.ne.s32.totalorder %s51, %s52
      %p64 = scmp.eq.s32.totalorder %s21, 1
      %p65 = por %p63, %p64
      %p67 = scmp.ne.s32.totalorder %s52, %s66
      %p68 = scmp.eq.s32.totalorder %s21, 0
      %p69 = por %p67, %p68
      %s71 = sadd.s32 %s70, 1
      %p74 = scmp.eq.s32.totalorder %s15, 1
      %p75 = scmp.ne.s32.totalorder %s70, %s72
      %p76 = scmp.eq.s32.totalorder %s15, 0
      %p77 = por %p75, %p76
      %p78 = scmp.ne.s32.totalorder %s70, %s72
      %p79 = scmp.eq.s32.totalorder %s20, 1
      %p80 = por %p78, %p79
      %p81 = scmp.ne.s32.totalorder %s72, %s73
      %p82 = scmp.eq.s32.totalorder %s20, 0
      %p83 = por %p81, %p82
      %p84 = scmp.ne.s32.totalorder %s72, %s73
      %p85 = scmp.eq.s32.totalorder %s21, 1
      %p86 = por %p84, %p85
      %p88 = scmp.ne.s32.totalorder %s73, %s87
      %p89 = scmp.eq.s32.totalorder %s21, 0
      %p90 = por %p88, %p89
      %s92 = sadd.s32 %s91, 1
      %p95 = scmp.eq.s32.totalorder %s15, 1
      %p96 = scmp.ne.s32.totalorder %s91, %s93
      %p97 = scmp.eq.s32.totalorder %s15, 0
      %p98 = por %p96, %p97
      %p99 = scmp.ne.s32.totalorder %s91, %s93
      %p100 = scmp.eq.s32.totalorder %s20, 1
      %p101 = por %p99, %p100
      %p102 = scmp.ne.s32.totalorder %s93, %s94
      %p103 = scmp.eq.s32.totalorder %s20, 0
      %p104 = por %p102, %p103
      %p105 = scmp.ne.s32.totalorder %s93, %s94
      %p106 = scmp.eq.s32.totalorder %s21, 1
      %p107 = por %p105, %p106
      %p109 = scmp.ne.s32.totalorder %s94, %s108
      %p110 = scmp.eq.s32.totalorder %s21, 0
      %p111 = por %p109, %p110
      %s112 = ssub.s32 %s15, %s22
      %p113 = scmp.eq.s32.totalorder %s112, 0
      %s115 = sadd.s32 %s114, 1
      %s116 = scalar_select %p113, %s114, %s115
      %p119 = pneg %p113
      %p120 = scmp.eq.s32.totalorder %s15, 1
      %p121 = por %p119, %p120
      %p122 = scmp.ne.s32.totalorder %s114, %s117
      %p123 = scmp.eq.s32.totalorder %s15, 0
      %p124 = por %p122, %p123
      %p125 = scmp.ne.s32.totalorder %s114, %s117
      %p126 = scmp.eq.s32.totalorder %s20, 1
      %p127 = por %p125, %p126
      %p128 = scmp.ne.s32.totalorder %s117, %s118
      %p129 = scmp.eq.s32.totalorder %s20, 0
      %p130 = por %p128, %p129
      %p131 = scmp.ne.s32.totalorder %s117, %s118
      %p132 = scmp.eq.s32.totalorder %s21, 1
      %p133 = por %p131, %p132
      %p135 = scmp.ne.s32.totalorder %s118, %s134
      %p136 = scmp.eq.s32.totalorder %s21, 0
      %p137 = por %p135, %p136
      %s138 = ssub.s32 %s15, %s22
      %p139 = scmp.eq.s32.totalorder %s138, 0
      %s141 = sadd.s32 %s140, 1
      %s142 = scalar_select %p139, %s140, %s141
      %p145 = pneg %p139
      %p146 = scmp.eq.s32.totalorder %s15, 1
      %p147 = por %p145, %p146
      %p148 = scmp.ne.s32.totalorder %s140, %s143
      %p149 = scmp.eq.s32.totalorder %s15, 0
      %p150 = por %p148, %p149
      %p151 = scmp.ne.s32.totalorder %s140, %s143
      %p152 = scmp.eq.s32.totalorder %s20, 1
      %p153 = por %p151, %p152
      %p154 = scmp.ne.s32.totalorder %s143, %s144
      %p155 = scmp.eq.s32.totalorder %s20, 0
      %p156 = por %p154, %p155
      %p157 = scmp.ne.s32.totalorder %s143, %s144
      %p158 = scmp.eq.s32.totalorder %s21, 1
      %p159 = por %p157, %p158
      %p161 = scmp.ne.s32.totalorder %s144, %s160
      %p162 = scmp.eq.s32.totalorder %s21, 0
      %p163 = por %p161, %p162
      %p164 = scmp.le.s32.totalorder 1, %s15
      %p165 = scmp.lt.s32.totalorder %s15, 3
      %p166 = pnand %p164, %p165
      %p167 = pneg %p166
      // Predicated region
      $region9: #{self_attention.1} parent=5 // pred_check
        _
      $region10: #{self_attention.1} parent=5 // pred_check_branch
        %169 = sbr.rel (%p166) target = $region12
      $region11: #{self_attention.1} parent=5 // pred_region
        %s170 = ssub.s32 %s15, 1
        // Predicated region
        $region13: #{self_attention.1} parent=11 // pred_check
          %p171 = pneg %p62
        $region14: #{self_attention.1} parent=11 // pred_check_branch
          %173 = sbr.rel (%p171) target = $region16
        $region15: #{self_attention.1} parent=11 // pred_region
          _
        $region16: #{self_attention.1} parent=11 // pred_fallthru
          _
        // Predicated region
        $region17: #{self_attention.1} parent=11 // pred_check
          %p174 = pneg %p83
        $region18: #{self_attention.1} parent=11 // pred_check_branch
          %176 = sbr.rel (%p174) target = $region20
        $region19: #{self_attention.1} parent=11 // pred_region
          _
        $region20: #{self_attention.1} parent=11 // pred_fallthru
          _
        // Predicated region
        $region21: #{self_attention.1} parent=11 // pred_check
          %p177 = pneg %p104
        $region22: #{self_attention.1} parent=11 // pred_check_branch
          %179 = sbr.rel (%p177) target = $region24
        $region23: #{self_attention.1} parent=11 // pred_region
          _
        $region24: #{self_attention.1} parent=11 // pred_fallthru
          _
      $region12: #{self_attention.1} parent=5 // pred_fallthru
        _
      %p180 = scmp.lt.s32.totalorder %s15, 2
      // Predicated region
      $region25: #{self_attention.1} parent=5 // pred_check
        %p181 = pneg %p180
      $region26: #{self_attention.1} parent=5 // pred_check_branch
        %183 = sbr.rel (%p181) target = $region28
      $region27: #{self_attention.1} parent=5 // pred_region
        // Predicated region
        $region29: #{self_attention.1} parent=27 // pred_check
          %p184 = pneg %p35
        $region30: #{self_attention.1} parent=27 // pred_check_branch
          %186 = sbr.rel (%p184) target = $region32
        $region31: #{self_attention.1} parent=27 // pred_region
          %s187 = smul.u32 2, %s15
          %p188 = scmp.lt.s32.totalorder %s187, 3
          %s189 = scalar_select %p188, %s187, 3
          %s190 = smul.addr %s189, 8
          %s191 = scalar_lea.vmem %s0, %s190
          %s192 = smul.u32 2, %s15
        $region32: #{self_attention.1} parent=27 // pred_fallthru
          _
      $region28: #{self_attention.1} parent=5 // pred_fallthru
        _
      %p193 = scmp.le.s32.totalorder 1, %s15
      %p194 = scmp.lt.s32.totalorder %s15, 3
      %p195 = pnand %p193, %p194
      %p196 = pneg %p195
      // Predicated region
      $region33: #{self_attention.1} parent=5 // pred_check
        _
      $region34: #{self_attention.1} parent=5 // pred_check_branch
        %198 = sbr.rel (%p195) target = $region36
      $region35: #{self_attention.1} parent=5 // pred_region
        %s199 = ssub.s32 %s15, 1
        %s200 = smul.u32 2, %s20
        %p201 = scmp.lt.s32.totalorder %s200, 3
        %s202 = scalar_select %p201, %s200, 3
        %s203 = smul.addr %s202, 8
        %s204 = scalar_lea.vmem %s0, %s203
        %p205 = pneg %p41
        %p206 = pneg %p38
        %p207 = pneg %p62
        %p208 = pneg %p59
        %p209 = pneg %p83
        %p210 = pneg %p80
        %p211 = pneg %p104
        %p212 = pneg %p101
        %p213 = pneg %p130
        %p214 = pneg %p127
        %s215 = sand.u32 %s117, 1
        %s216 = scalar_lea.sflag [#allocation3], %s215
        %s217 = sand.u32 %s117, 1
        %s218 = smul.addr %s217, 8
        %s219 = scalar_lea.vmem [#allocation2], %s218
        %p220 = pneg %p156
        %p221 = pneg %p153
        %s222 = smul.u32 2, %s20
        %p223 = scmp.lt.s32.totalorder %s222, 3
        %s224 = scalar_select %p223, %s222, 3
        %s225 = smul.addr %s224, 8
        %s226 = scalar_lea.vmem %s5, %s225
        %s227 = smul.u32 2, %s20
        %p228 = scmp.lt.s32.totalorder %s227, 3
        %s229 = scalar_select %p228, %s227, 3
        %s230 = smul.addr %s229, 8
        %s231 = scalar_lea.vmem %s0, %s230
        %s232 = smul.u32 2, %s20
        %s233 = smul.u32 2, %s20
        %p234 = scmp.lt.s32.totalorder %s233, 3
        %s235 = scalar_select %p234, %s233, 3
        %s236 = smul.addr %s235, 8
        %s237 = scalar_lea.vmem %s5, %s236
        %s238 = smul.u32 2, %s20
        %v240 = vld [vmem:[%s231] sm:$0xff]
        %v241 = vld [vmem:[%s231 + $0x8] sm:$0xff]
        %v242 = vpack.c.bf16 %v241, %v240
        %v243 = vld [vmem:[%s1] sm:$0xff]
        %v244 = vld [vmem:[%s1 + $0x8] sm:$0xff]
        %v245 = vld [vmem:[%s1 + $0x10] sm:$0xff]
        %v246 = vld [vmem:[%s1 + $0x18] sm:$0xff]
        %v247 = vld [vmem:[%s1 + $0x20] sm:$0xff]
        %v248 = vld [vmem:[%s1 + $0x28] sm:$0xff]
        %v249 = vld [vmem:[%s1 + $0x30] sm:$0xff]
        %v250 = vld [vmem:[%s1 + $0x38] sm:$0xff]
        %v251 = vld [vmem:[%s1 + $0x40] sm:$0xff]
        %v252 = vld [vmem:[%s1 + $0x48] sm:$0xff]
        %v253 = vld [vmem:[%s1 + $0x50] sm:$0xff]
        %v254 = vld [vmem:[%s1 + $0x58] sm:$0xff]
        %v255 = vld [vmem:[%s1 + $0x60] sm:$0xff]
        %v256 = vld [vmem:[%s1 + $0x68] sm:$0xff]
        %v257 = vld [vmem:[%s1 + $0x70] sm:$0xff]
        %v258 = vld [vmem:[%s1 + $0x78] sm:$0xff]
        %v259 = vld [vmem:[%s2] sm:$0x3]
        %v261 = vlaneseq
        %v262 = vshrl.u32 %v261, 7
        %v263 = vsub.s32 0, %v262
        %v264 = vrot.slane %v259, %v263
        %v265 = vlaneseq
        %v266 = vshrl.u32 %v265, 7
        %v267 = vsub.s32 1, %v266
        %v268 = vrot.slane %v259, %v267
        %v287 = vunpack.c.l.b16 %v243
        %v288 = vunpack.c.h.b16 %v243
        %v289 = vunpack.c.l.b16 %v244
        %v290 = vunpack.c.h.b16 %v244
        %v291 = vunpack.c.l.b16 %v245
        %v292 = vunpack.c.h.b16 %v245
        %v293 = vunpack.c.l.b16 %v246
        %v294 = vunpack.c.h.b16 %v246
        %v295 = vunpack.c.l.b16 %v247
        %v296 = vunpack.c.h.b16 %v247
        %v297 = vunpack.c.l.b16 %v248
        %v298 = vunpack.c.h.b16 %v248
        %v299 = vunpack.c.l.b16 %v249
        %v300 = vunpack.c.h.b16 %v249
        %v301 = vunpack.c.l.b16 %v250
        %v302 = vunpack.c.h.b16 %v250
        %v303 = vunpack.c.l.b16 %v251
        %v304 = vunpack.c.h.b16 %v251
        %v305 = vunpack.c.l.b16 %v252
        %v306 = vunpack.c.h.b16 %v252
        %v307 = vunpack.c.l.b16 %v253
        %v308 = vunpack.c.h.b16 %v253
        %v309 = vunpack.c.l.b16 %v254
        %v310 = vunpack.c.h.b16 %v254
        %v311 = vunpack.c.l.b16 %v255
        %v312 = vunpack.c.h.b16 %v255
        %v313 = vunpack.c.l.b16 %v256
        %v314 = vunpack.c.h.b16 %v256
        %v315 = vunpack.c.l.b16 %v257
        %v316 = vunpack.c.h.b16 %v257
        %v317 = vunpack.c.l.b16 %v258
        %v318 = vunpack.c.h.b16 %v258
        %v319 = vpack.c.b16 %v289, %v287
        %v320 = vpack.c.b16 %v290, %v288
        %v321 = vpack.c.b16 %v293, %v291
        %v322 = vpack.c.b16 %v294, %v292
        %v323 = vpack.c.b16 %v297, %v295
        %v324 = vpack.c.b16 %v298, %v296
        %v325 = vpack.c.b16 %v301, %v299
        %v326 = vpack.c.b16 %v302, %v300
        %v327 = vpack.c.b16 %v305, %v303
        %v328 = vpack.c.b16 %v306, %v304
        %v329 = vpack.c.b16 %v309, %v307
        %v330 = vpack.c.b16 %v310, %v308
        %v331 = vpack.c.b16 %v313, %v311
        %v332 = vpack.c.b16 %v314, %v312
        %v333 = vpack.c.b16 %v317, %v315
        %v334 = vpack.c.b16 %v318, %v316
        %351 = vmatprep.subr.bf16.mxu0 %v334
        %352 = vmatpush1.bf16.msra.mxu0 %v333
        %353 = vmatprep.subr.bf16.mxu0 %v332
        %354 = vmatpush1.bf16.msra.mxu0 %v331
        %355 = vmatprep.subr.bf16.mxu0 %v330
        %356 = vmatpush1.bf16.msra.mxu0 %v329
        %357 = vmatprep.subr.bf16.mxu0 %v328
        %358 = vmatpush1.bf16.msra.mxu0 %v327
        %359 = vmatprep.subr.bf16.mxu0 %v326
        %360 = vmatpush1.bf16.msra.mxu0 %v325
        %361 = vmatprep.subr.bf16.mxu0 %v324
        %362 = vmatpush1.bf16.msra.mxu0 %v323
        %363 = vmatprep.subr.bf16.mxu0 %v322
        %364 = vmatpush1.bf16.msra.mxu0 %v321
        %365 = vmatprep.subr.bf16.mxu0 %v320
        %366 = vmatpush1.bf16.msra.mxu0 %v319
        %367 = vmatprep.subr.bf16.mxu0 0
        %368 = vmatpush2.bf16.msra.mxu0 0
        %369 = vmatprep.subr.bf16.mxu0 0
        %370 = vmatpush2.bf16.msra.mxu0 0
        %371 = vmatprep.subr.bf16.mxu0 0
        %372 = vmatpush2.bf16.msra.mxu0 0
        %373 = vmatprep.subr.bf16.mxu0 0
        %374 = vmatpush2.bf16.msra.mxu0 0
        %375 = vmatprep.subr.bf16.mxu0 0
        %376 = vmatpush2.bf16.msra.mxu0 0
        %377 = vmatprep.subr.bf16.mxu0 0
        %378 = vmatpush2.bf16.msra.mxu0 0
        %379 = vmatprep.subr.bf16.mxu0 0
        %380 = vmatpush2.bf16.msra.mxu0 0
        %381 = vmatprep.subr.bf16.mxu0 0
        %382 = vmatpush2.bf16.msra.mxu0 0
        %383 = vmatprep.mubr.bf16.mxu0 0
        %384 = vmatmul.mubr.bf16.gmra.mxu0 %v242
        %v385 = vpop.f32.mrf.mxu0
        %v386 = vadd.f32 %v264, %v385
        %v387 = vpop.f32.mrf.mxu0
        %v388 = vadd.f32 %v268, %v387
        %v389 = vpop.f32.mrf.mxu0
        %v390 = vadd.f32 %v264, %v389
        %v391 = vpop.f32.mrf.mxu0
        %v392 = vadd.f32 %v268, %v391
        %393 = vdwg.mxu0
        %v394 = vmax.f32 %v386, 0.0
        %v395 = vmax.f32 %v388, 0.0
        %v396 = vmax.f32 %v390, 0.0
        %v397 = vmax.f32 %v392, 0.0
        %v398 = vld [vmem:[%s3] sm:$0x3]
        %v400 = vlaneseq
        %v401 = vshrl.u32 %v400, 7
        %v402 = vsub.s32 0, %v401
        %v403 = vrot.slane %v398, %v402
        %v404 = vlaneseq
        %v405 = vshrl.u32 %v404, 7
        %v406 = vsub.s32 1, %v405
        %v407 = vrot.slane %v398, %v406
        %v410 = vmul.f32 %v394, %v403
        %v411 = vmul.f32 %v395, %v407
        %v412 = vmul.f32 %v396, %v403
        %v413 = vmul.f32 %v397, %v407
        %v414 = vlaneseq
        %v415 = vand.u32 %v414, 127
        %vm416 = vcmask 523264
        %v417 = vsel %vm416, %v410, 0.0
        %418 = vadd.xlane.f32.xlu0 %v417
        %v419 = vpop.xlane.xlu0 %418
        %v420 = vsel %vm416, %v412, 0.0
        %421 = vadd.xlane.f32.xlu0 %v420
        %v422 = vpop.xlane.xlu0 %421
        %vm423 = vcmp.eq.s32.totalorder %v415, 0
        %v424 = vsel %vm423, 1, 0
        %vm425 = vcmp.eq.s32.totalorder %v424, 1
        %v426 = vsel %vm425, %v419, 0.0
        %v427 = vsel %vm425, %v422, 0.0
        %v428 = vadd.f32 %v426, 0.0
        %v429 = vadd.f32 %v427, 0.0
        %432 = vrot.lane.b32.xlu0 %v410, 64
        %v433 = vpop.permute.xlu0 %432
        %434 = vrot.lane.b32.xlu0 %v412, 64
        %v435 = vpop.permute.xlu0 %434
        %v438 = vsel %vm416, %v433, 0.0
        %439 = vadd.xlane.f32.xlu0 %v438
        %v440 = vpop.xlane.xlu0 %439
        %v441 = vsel %vm416, %v435, 0.0
        %442 = vadd.xlane.f32.xlu0 %v441
        %v443 = vpop.xlane.xlu0 %442
        %vm444 = vcmp.eq.s32.totalorder %v415, 1
        %v445 = vsel %vm444, 1, 0
        %vm446 = vcmp.eq.s32.totalorder %v445, 1
        %v447 = vsel %vm446, %v440, 0.0
        %v448 = vsel %vm446, %v443, 0.0
        %v449 = vadd.f32 %v428, %v447
        %v450 = vadd.f32 %v429, %v448
        %v451 = vsel %vm416, %v411, 0.0
        %452 = vadd.xlane.f32.xlu0 %v451
        %v453 = vpop.xlane.xlu0 %452
        %v454 = vsel %vm416, %v413, 0.0
        %455 = vadd.xlane.f32.xlu0 %v454
        %v456 = vpop.xlane.xlu0 %455
        %vm457 = vcmp.eq.s32.totalorder %v415, 2
        %v458 = vsel %vm457, 1, 0
        %vm459 = vcmp.eq.s32.totalorder %v458, 1
        %v460 = vsel %vm459, %v453, 0.0
        %v461 = vsel %vm459, %v456, 0.0
        %v462 = vadd.f32 %v449, %v460
        %v463 = vadd.f32 %v450, %v461
        %466 = vrot.lane.b32.xlu0 %v411, 64
        %v467 = vpop.permute.xlu0 %466
        %468 = vrot.lane.b32.xlu0 %v413, 64
        %v469 = vpop.permute.xlu0 %468
        %v472 = vsel %vm416, %v467, 0.0
        %473 = vadd.xlane.f32.xlu0 %v472
        %v474 = vpop.xlane.xlu0 %473
        %v475 = vsel %vm416, %v469, 0.0
        %476 = vadd.xlane.f32.xlu0 %v475
        %v477 = vpop.xlane.xlu0 %476
        %vm478 = vcmp.eq.s32.totalorder %v415, 3
        %v479 = vsel %vm478, 1, 0
        %vm480 = vcmp.eq.s32.totalorder %v479, 1
        %v481 = vsel %vm480, %v474, 0.0
        %v482 = vsel %vm480, %v477, 0.0
        %v483 = vadd.f32 %v462, %v481
        %v484 = vadd.f32 %v463, %v482
        %v487 = vcombine.high %v483, %v483
        %v489 = vunpack.c.l.s4 1983009808
        %v490 = vunpack.c.0.s8 %v489
        %v491 = vlaneseq
        %v492 = vshrl.u32 %v491, 7
        %v493 = vsub.s32 %v490, %v492
        %v494 = vrot.slane %v483, %v493
        %v496 = vunpack.c.l.s4 1983009808
        %v497 = vunpack.c.0.s8 %v496
        %v498 = vlaneseq
        %v499 = vshrl.u32 %v498, 7
        %v500 = vsub.s32 %v497, %v499
        %v501 = vrot.slane %v487, %v500
        %v502 = vcombine.high %v494, %v494
        %v503 = vcombine.high %v501, %v501
        %v504 = vcombine.high %v484, %v484
        %v506 = vunpack.c.l.s4 1983009808
        %v507 = vunpack.c.0.s8 %v506
        %v508 = vlaneseq
        %v509 = vshrl.u32 %v508, 7
        %v510 = vsub.s32 %v507, %v509
        %v511 = vrot.slane %v484, %v510
        %v513 = vunpack.c.l.s4 1983009808
        %v514 = vunpack.c.0.s8 %v513
        %v515 = vlaneseq
        %v516 = vshrl.u32 %v515, 7
        %v517 = vsub.s32 %v514, %v516
        %v518 = vrot.slane %v504, %v517
        %v519 = vcombine.high %v511, %v511
        %v520 = vcombine.high %v518, %v518
        %vm529 = vcmask 25600
        %v530 = vsel %vm529, %v494, -inf
        %531 = vmax.xlane.f32.xlu0 %v530
        %v532 = vpop.xlane.xlu0 %531
        %v533 = vsel %vm529, %v502, -inf
        %534 = vmax.xlane.f32.xlu0 %v533
        %v535 = vpop.xlane.xlu0 %534
        %v536 = vsel %vm529, %v501, -inf
        %537 = vmax.xlane.f32.xlu0 %v536
        %v538 = vpop.xlane.xlu0 %537
        %v539 = vsel %vm529, %v503, -inf
        %540 = vmax.xlane.f32.xlu0 %v539
        %v541 = vpop.xlane.xlu0 %540
        %v542 = vsel %vm529, %v511, -inf
        %543 = vmax.xlane.f32.xlu0 %v542
        %v544 = vpop.xlane.xlu0 %543
        %v545 = vsel %vm529, %v519, -inf
        %546 = vmax.xlane.f32.xlu0 %v545
        %v547 = vpop.xlane.xlu0 %546
        %v548 = vsel %vm529, %v518, -inf
        %549 = vmax.xlane.f32.xlu0 %v548
        %v550 = vpop.xlane.xlu0 %549
        %v551 = vsel %vm529, %v520, -inf
        %552 = vmax.xlane.f32.xlu0 %v551
        %v553 = vpop.xlane.xlu0 %552
        %vm554 = vcmask 1041408
        %v555 = vsel %vm554, %v532, -inf
        %v556 = vrot.slane %v555, 4
        %v557 = vmax.f32 %v555, %v556
        %v558 = vrot.slane %v557, 2
        %v559 = vmax.f32 %v557, %v558
        %v560 = vrot.slane %v559, 1
        %v561 = vmax.f32 %v559, %v560
        %v562 = vsel %vm554, %v535, -inf
        %v563 = vrot.slane %v562, 4
        %v564 = vmax.f32 %v562, %v563
        %v565 = vrot.slane %v564, 2
        %v566 = vmax.f32 %v564, %v565
        %v567 = vrot.slane %v566, 1
        %v568 = vmax.f32 %v566, %v567
        %v569 = vsel %vm554, %v538, -inf
        %v570 = vrot.slane %v569, 4
        %v571 = vmax.f32 %v569, %v570
        %v572 = vrot.slane %v571, 2
        %v573 = vmax.f32 %v571, %v572
        %v574 = vrot.slane %v573, 1
        %v575 = vmax.f32 %v573, %v574
        %v576 = vsel %vm554, %v541, -inf
        %v577 = vrot.slane %v576, 4
        %v578 = vmax.f32 %v576, %v577
        %v579 = vrot.slane %v578, 2
        %v580 = vmax.f32 %v578, %v579
        %v581 = vrot.slane %v580, 1
        %v582 = vmax.f32 %v580, %v581
        %v583 = vsel %vm554, %v544, -inf
        %v584 = vrot.slane %v583, 4
        %v585 = vmax.f32 %v583, %v584
        %v586 = vrot.slane %v585, 2
        %v587 = vmax.f32 %v585, %v586
        %v588 = vrot.slane %v587, 1
        %v589 = vmax.f32 %v587, %v588
        %v590 = vsel %vm554, %v547, -inf
        %v591 = vrot.slane %v590, 4
        %v592 = vmax.f32 %v590, %v591
        %v593 = vrot.slane %v592, 2
        %v594 = vmax.f32 %v592, %v593
        %v595 = vrot.slane %v594, 1
        %v596 = vmax.f32 %v594, %v595
        %v597 = vsel %vm554, %v550, -inf
        %v598 = vrot.slane %v597, 4
        %v599 = vmax.f32 %v597, %v598
        %v600 = vrot.slane %v599, 2
        %v601 = vmax.f32 %v599, %v600
        %v602 = vrot.slane %v601, 1
        %v603 = vmax.f32 %v601, %v602
        %v604 = vsel %vm554, %v553, -inf
        %v605 = vrot.slane %v604, 4
        %v606 = vmax.f32 %v604, %v605
        %v607 = vrot.slane %v606, 2
        %v608 = vmax.f32 %v606, %v607
        %v609 = vrot.slane %v608, 1
        %v610 = vmax.f32 %v608, %v609
        %v611 = vsub.f32 %v494, %v561
        %v612 = vsub.f32 %v502, %v568
        %v613 = vsub.f32 %v501, %v575
        %v614 = vsub.f32 %v503, %v582
        %v615 = vsub.f32 %v511, %v589
        %v616 = vsub.f32 %v519, %v596
        %v617 = vsub.f32 %v518, %v603
        %v618 = vsub.f32 %v520, %v610
        %v619 = vmul.f32 %v611, 1.442695
        %v620 = vpow.pop %v619
        %v621 = vmul.f32 %v612, 1.442695
        %v622 = vpow.pop %v621
        %v623 = vmul.f32 %v613, 1.442695
        %v624 = vpow.pop %v623
        %v625 = vmul.f32 %v614, 1.442695
        %v626 = vpow.pop %v625
        %v627 = vmul.f32 %v615, 1.442695
        %v628 = vpow.pop %v627
        %v629 = vmul.f32 %v616, 1.442695
        %v630 = vpow.pop %v629
        %v631 = vmul.f32 %v617, 1.442695
        %v632 = vpow.pop %v631
        %v633 = vmul.f32 %v618, 1.442695
        %v634 = vpow.pop %v633
        %v635 = vsel %vm529, %v620, 0.0
        %636 = vadd.xlane.f32.xlu0 %v635
        %v637 = vpop.xlane.xlu0 %636
        %v638 = vsel %vm529, %v622, 0.0
        %639 = vadd.xlane.f32.xlu0 %v638
        %v640 = vpop.xlane.xlu0 %639
        %v641 = vsel %vm529, %v624, 0.0
        %642 = vadd.xlane.f32.xlu0 %v641
        %v643 = vpop.xlane.xlu0 %642
        %v644 = vsel %vm529, %v626, 0.0
        %645 = vadd.xlane.f32.xlu0 %v644
        %v646 = vpop.xlane.xlu0 %645
        %v647 = vsel %vm529, %v628, 0.0
        %648 = vadd.xlane.f32.xlu0 %v647
        %v649 = vpop.xlane.xlu0 %648
        %v650 = vsel %vm529, %v630, 0.0
        %651 = vadd.xlane.f32.xlu0 %v650
        %v652 = vpop.xlane.xlu0 %651
        %v653 = vsel %vm529, %v632, 0.0
        %654 = vadd.xlane.f32.xlu0 %v653
        %v655 = vpop.xlane.xlu0 %654
        %v656 = vsel %vm529, %v634, 0.0
        %657 = vadd.xlane.f32.xlu0 %v656
        %v658 = vpop.xlane.xlu0 %657
        %v659 = vsel %vm554, %v637, 0.0
        %v660 = vrot.slane %v659, 4
        %v661 = vadd.f32 %v659, %v660
        %v662 = vrot.slane %v661, 2
        %v663 = vadd.f32 %v661, %v662
        %v664 = vrot.slane %v663, 1
        %v665 = vadd.f32 %v663, %v664
        %v666 = vsel %vm554, %v640, 0.0
        %v667 = vrot.slane %v666, 4
        %v668 = vadd.f32 %v666, %v667
        %v669 = vrot.slane %v668, 2
        %v670 = vadd.f32 %v668, %v669
        %v671 = vrot.slane %v670, 1
        %v672 = vadd.f32 %v670, %v671
        %v673 = vsel %vm554, %v643, 0.0
        %v674 = vrot.slane %v673, 4
        %v675 = vadd.f32 %v673, %v674
        %v676 = vrot.slane %v675, 2
        %v677 = vadd.f32 %v675, %v676
        %v678 = vrot.slane %v677, 1
        %v679 = vadd.f32 %v677, %v678
        %v680 = vsel %vm554, %v646, 0.0
        %v681 = vrot.slane %v680, 4
        %v682 = vadd.f32 %v680, %v681
        %v683 = vrot.slane %v682, 2
        %v684 = vadd.f32 %v682, %v683
        %v685 = vrot.slane %v684, 1
        %v686 = vadd.f32 %v684, %v685
        %v687 = vsel %vm554, %v649, 0.0
        %v688 = vrot.slane %v687, 4
        %v689 = vadd.f32 %v687, %v688
        %v690 = vrot.slane %v689, 2
        %v691 = vadd.f32 %v689, %v690
        %v692 = vrot.slane %v691, 1
        %v693 = vadd.f32 %v691, %v692
        %v694 = vsel %vm554, %v652, 0.0
        %v695 = vrot.slane %v694, 4
        %v696 = vadd.f32 %v694, %v695
        %v697 = vrot.slane %v696, 2
        %v698 = vadd.f32 %v696, %v697
        %v699 = vrot.slane %v698, 1
        %v700 = vadd.f32 %v698, %v699
        %v701 = vsel %vm554, %v655, 0.0
        %v702 = vrot.slane %v701, 4
        %v703 = vadd.f32 %v701, %v702
        %v704 = vrot.slane %v703, 2
        %v705 = vadd.f32 %v703, %v704
        %v706 = vrot.slane %v705, 1
        %v707 = vadd.f32 %v705, %v706
        %v708 = vsel %vm554, %v658, 0.0
        %v709 = vrot.slane %v708, 4
        %v710 = vadd.f32 %v708, %v709
        %v711 = vrot.slane %v710, 2
        %v712 = vadd.f32 %v710, %v711
        %v713 = vrot.slane %v712, 1
        %v714 = vadd.f32 %v712, %v713
        %v715 = vrcp.pop %v665
        %v716 = vmul.f32 %v620, %v715
        %v717 = vrcp.pop %v672
        %v718 = vmul.f32 %v622, %v717
        %v719 = vrcp.pop %v679
        %v720 = vmul.f32 %v624, %v719
        %v721 = vrcp.pop %v686
        %v722 = vmul.f32 %v626, %v721
        %v723 = vrcp.pop %v693
        %v724 = vmul.f32 %v628, %v723
        %v725 = vrcp.pop %v700
        %v726 = vmul.f32 %v630, %v725
        %v727 = vrcp.pop %v707
        %v728 = vmul.f32 %v632, %v727
        %v729 = vrcp.pop %v714
        %v730 = vmul.f32 %v634, %v729
        %v739 = vcombine.low %v716, %v718
        %v740 = vcombine.low %v720, %v722
        %v742 = vunpack.c.l.s4 1983009808
        %v743 = vunpack.c.0.s8 %v742
        %v744 = vlaneseq
        %v745 = vshrl.u32 %v744, 7
        %v746 = vsub.s32 %v743, %v745
        %v747 = vrot.slane %v739, %v746
        %v749 = vunpack.c.l.s4 1983009808
        %v750 = vunpack.c.0.s8 %v749
        %v751 = vlaneseq
        %v752 = vshrl.u32 %v751, 7
        %v753 = vsub.s32 %v750, %v752
        %v754 = vrot.slane %v740, %v753
        %v755 = vcombine.low %v747, %v754
        %v756 = vcombine.low %v724, %v726
        %v757 = vcombine.low %v728, %v730
        %v759 = vunpack.c.l.s4 1983009808
        %v760 = vunpack.c.0.s8 %v759
        %v761 = vlaneseq
        %v762 = vshrl.u32 %v761, 7
        %v763 = vsub.s32 %v760, %v762
        %v764 = vrot.slane %v756, %v763
        %v766 = vunpack.c.l.s4 1983009808
        %v767 = vunpack.c.0.s8 %v766
        %v768 = vlaneseq
        %v769 = vshrl.u32 %v768, 7
        %v770 = vsub.s32 %v767, %v769
        %v771 = vrot.slane %v757, %v770
        %v772 = vcombine.low %v764, %v771
        %vm775 = vcmask 31744
        %776 = vst.msk [vmem:[%s237] sm:$0xff] %vm775, %v755
        %777 = vst.msk [vmem:[%s237 + $0x8] sm:$0xff] %vm775, %v772
        %778 = vset.pattern.permute.xlu0 0
        %779 = vperm.xlu0 %778, %v716
        %v780 = vpop.permute.xlu0 %779
        %v783 = vunpack.c.l.s4 269488144
        %v784 = vunpack.c.0.s8 %v783
        %v785 = vlaneseq
        %v786 = vshrl.u32 %v785, 7
        %v787 = vsub.s32 %v784, %v786
        %v788 = vrot.slane %v780, %v787
        %789 = vset.pattern.permute.xlu0 0
        %790 = vperm.xlu0 %789, %v718
        %v791 = vpop.permute.xlu0 %790
        %v794 = vunpack.c.l.s4 269488144
        %v795 = vunpack.c.0.s8 %v794
        %v796 = vlaneseq
        %v797 = vshrl.u32 %v796, 7
        %v798 = vsub.s32 %v795, %v797
        %v799 = vrot.slane %v791, %v798
        %800 = vset.pattern.permute.xlu0 0
        %801 = vperm.xlu0 %800, %v720
        %v802 = vpop.permute.xlu0 %801
        %v805 = vunpack.c.l.s4 269488144
        %v806 = vunpack.c.0.s8 %v805
        %v807 = vlaneseq
        %v808 = vshrl.u32 %v807, 7
        %v809 = vsub.s32 %v806, %v808
        %v810 = vrot.slane %v802, %v809
        %811 = vset.pattern.permute.xlu0 0
        %812 = vperm.xlu0 %811, %v722
        %v813 = vpop.permute.xlu0 %812
        %v816 = vunpack.c.l.s4 269488144
        %v817 = vunpack.c.0.s8 %v816
        %v818 = vlaneseq
        %v819 = vshrl.u32 %v818, 7
        %v820 = vsub.s32 %v817, %v819
        %v821 = vrot.slane %v813, %v820
        %822 = vset.pattern.permute.xlu0 0
        %823 = vperm.xlu0 %822, %v724
        %v824 = vpop.permute.xlu0 %823
        %v827 = vunpack.c.l.s4 269488144
        %v828 = vunpack.c.0.s8 %v827
        %v829 = vlaneseq
        %v830 = vshrl.u32 %v829, 7
        %v831 = vsub.s32 %v828, %v830
        %v832 = vrot.slane %v824, %v831
        %833 = vset.pattern.permute.xlu0 0
        %834 = vperm.xlu0 %833, %v726
        %v835 = vpop.permute.xlu0 %834
        %v838 = vunpack.c.l.s4 269488144
        %v839 = vunpack.c.0.s8 %v838
        %v840 = vlaneseq
        %v841 = vshrl.u32 %v840, 7
        %v842 = vsub.s32 %v839, %v841
        %v843 = vrot.slane %v835, %v842
        %844 = vset.pattern.permute.xlu0 0
        %845 = vperm.xlu0 %844, %v728
        %v846 = vpop.permute.xlu0 %845
        %v849 = vunpack.c.l.s4 269488144
        %v850 = vunpack.c.0.s8 %v849
        %v851 = vlaneseq
        %v852 = vshrl.u32 %v851, 7
        %v853 = vsub.s32 %v850, %v852
        %v854 = vrot.slane %v846, %v853
        %855 = vset.pattern.permute.xlu0 0
        %856 = vperm.xlu0 %855, %v730
        %v857 = vpop.permute.xlu0 %856
        %v860 = vunpack.c.l.s4 269488144
        %v861 = vunpack.c.0.s8 %v860
        %v862 = vlaneseq
        %v863 = vshrl.u32 %v862, 7
        %v864 = vsub.s32 %v861, %v863
        %v865 = vrot.slane %v857, %v864
        %v868 = vcombine.high %v240, %v240
        %v870 = vunpack.c.l.s4 1983009808
        %v871 = vunpack.c.0.s8 %v870
        %v872 = vlaneseq
        %v873 = vshrl.u32 %v872, 7
        %v874 = vsub.s32 %v871, %v873
        %v875 = vrot.slane %v240, %v874
        %v877 = vunpack.c.l.s4 1983009808
        %v878 = vunpack.c.0.s8 %v877
        %v879 = vlaneseq
        %v880 = vshrl.u32 %v879, 7
        %v881 = vsub.s32 %v878, %v880
        %v882 = vrot.slane %v868, %v881
        %v883 = vcombine.high %v875, %v875
        %v884 = vcombine.high %v882, %v882
        %v885 = vcombine.high %v241, %v241
        %v887 = vunpack.c.l.s4 1983009808
        %v888 = vunpack.c.0.s8 %v887
        %v889 = vlaneseq
        %v890 = vshrl.u32 %v889, 7
        %v891 = vsub.s32 %v888, %v890
        %v892 = vrot.slane %v241, %v891
        %v894 = vunpack.c.l.s4 1983009808
        %v895 = vunpack.c.0.s8 %v894
        %v896 = vlaneseq
        %v897 = vshrl.u32 %v896, 7
        %v898 = vsub.s32 %v895, %v897
        %v899 = vrot.slane %v885, %v898
        %v900 = vcombine.high %v892, %v892
        %v901 = vcombine.high %v899, %v899
        %v910 = vmul.f32 %v788, %v875
        %v911 = vmul.f32 %v799, %v883
        %v912 = vmul.f32 %v810, %v882
        %v913 = vmul.f32 %v821, %v884
        %v914 = vmul.f32 %v832, %v892
        %v915 = vmul.f32 %v843, %v900
        %v916 = vmul.f32 %v854, %v899
        %v917 = vmul.f32 %v865, %v901
        %918 = vset.pattern.permute.xlu0 1
        %919 = vperm.xlu0 %918, %v716
        %v920 = vpop.permute.xlu0 %919
        %v923 = vunpack.c.l.s4 269488144
        %v924 = vunpack.c.0.s8 %v923
        %v925 = vlaneseq
        %v926 = vshrl.u32 %v925, 7
        %v927 = vsub.s32 %v924, %v926
        %v928 = vrot.slane %v920, %v927
        %929 = vset.pattern.permute.xlu0 1
        %930 = vperm.xlu0 %929, %v718
        %v931 = vpop.permute.xlu0 %930
        %v934 = vunpack.c.l.s4 269488144
        %v935 = vunpack.c.0.s8 %v934
        %v936 = vlaneseq
        %v937 = vshrl.u32 %v936, 7
        %v938 = vsub.s32 %v935, %v937
        %v939 = vrot.slane %v931, %v938
        %940 = vset.pattern.permute.xlu0 1
        %941 = vperm.xlu0 %940, %v720
        %v942 = vpop.permute.xlu0 %941
        %v945 = vunpack.c.l.s4 269488144
        %v946 = vunpack.c.0.s8 %v945
        %v947 = vlaneseq
        %v948 = vshrl.u32 %v947, 7
        %v949 = vsub.s32 %v946, %v948
        %v950 = vrot.slane %v942, %v949
        %951 = vset.pattern.permute.xlu0 1
        %952 = vperm.xlu0 %951, %v722
        %v953 = vpop.permute.xlu0 %952
        %v956 = vunpack.c.l.s4 269488144
        %v957 = vunpack.c.0.s8 %v956
        %v958 = vlaneseq
        %v959 = vshrl.u32 %v958, 7
        %v960 = vsub.s32 %v957, %v959
        %v961 = vrot.slane %v953, %v960
        %962 = vset.pattern.permute.xlu0 1
        %963 = vperm.xlu0 %962, %v724
        %v964 = vpop.permute.xlu0 %963
        %v967 = vunpack.c.l.s4 269488144
        %v968 = vunpack.c.0.s8 %v967
        %v969 = vlaneseq
        %v970 = vshrl.u32 %v969, 7
        %v971 = vsub.s32 %v968, %v970
        %v972 = vrot.slane %v964, %v971
        %973 = vset.pattern.permute.xlu0 1
        %974 = vperm.xlu0 %973, %v726
        %v975 = vpop.permute.xlu0 %974
        %v978 = vunpack.c.l.s4 269488144
        %v979 = vunpack.c.0.s8 %v978
        %v980 = vlaneseq
        %v981 = vshrl.u32 %v980, 7
        %v982 = vsub.s32 %v979, %v981
        %v983 = vrot.slane %v975, %v982
        %984 = vset.pattern.permute.xlu0 1
        %985 = vperm.xlu0 %984, %v728
        %v986 = vpop.permute.xlu0 %985
        %v989 = vunpack.c.l.s4 269488144
        %v990 = vunpack.c.0.s8 %v989
        %v991 = vlaneseq
        %v992 = vshrl.u32 %v991, 7
        %v993 = vsub.s32 %v990, %v992
        %v994 = vrot.slane %v986, %v993
        %995 = vset.pattern.permute.xlu0 1
        %996 = vperm.xlu0 %995, %v730
        %v997 = vpop.permute.xlu0 %996
        %v1000 = vunpack.c.l.s4 269488144
        %v1001 = vunpack.c.0.s8 %v1000
        %v1002 = vlaneseq
        %v1003 = vshrl.u32 %v1002, 7
        %v1004 = vsub.s32 %v1001, %v1003
        %v1005 = vrot.slane %v997, %v1004
        %1006 = vrot.lane.b32.xlu0 %v875, 96
        %v1007 = vpop.permute.xlu0 %1006
        %1008 = vrot.lane.b32.xlu0 %v883, 96
        %v1009 = vpop.permute.xlu0 %1008
        %1010 = vrot.lane.b32.xlu0 %v882, 96
        %v1011 = vpop.permute.xlu0 %1010
        %1012 = vrot.lane.b32.xlu0 %v884, 96
        %v1013 = vpop.permute.xlu0 %1012
        %1014 = vrot.lane.b32.xlu0 %v892, 96
        %v1015 = vpop.permute.xlu0 %1014
        %1016 = vrot.lane.b32.xlu0 %v900, 96
        %v1017 = vpop.permute.xlu0 %1016
        %1018 = vrot.lane.b32.xlu0 %v899, 96
        %v1019 = vpop.permute.xlu0 %1018
        %1020 = vrot.lane.b32.xlu0 %v901, 96
        %v1021 = vpop.permute.xlu0 %1020
        %v1030 = vmul.f32 %v928, %v1007
        %v1031 = vmul.f32 %v939, %v1009
        %v1032 = vmul.f32 %v950, %v1011
        %v1033 = vmul.f32 %v961, %v1013
        %v1034 = vmul.f32 %v972, %v1015
        %v1035 = vmul.f32 %v983, %v1017
        %v1036 = vmul.f32 %v994, %v1019
        %v1037 = vmul.f32 %v1005, %v1021
        %v1038 = vadd.f32 %v910, %v1030
        %v1039 = vadd.f32 %v911, %v1031
        %v1040 = vadd.f32 %v912, %v1032
        %v1041 = vadd.f32 %v913, %v1033
        %v1042 = vadd.f32 %v914, %v1034
        %v1043 = vadd.f32 %v915, %v1035
        %v1044 = vadd.f32 %v916, %v1036
        %v1045 = vadd.f32 %v917, %v1037
        %1046 = vset.pattern.permute.xlu0 2
        %1047 = vperm.xlu0 %1046, %v716
        %v1048 = vpop.permute.xlu0 %1047
        %v1051 = vunpack.c.l.s4 269488144
        %v1052 = vunpack.c.0.s8 %v1051
        %v1053 = vlaneseq
        %v1054 = vshrl.u32 %v1053, 7
        %v1055 = vsub.s32 %v1052, %v1054
        %v1056 = vrot.slane %v1048, %v1055
        %1057 = vset.pattern.permute.xlu0 2
        %1058 = vperm.xlu0 %1057, %v718
        %v1059 = vpop.permute.xlu0 %1058
        %v1062 = vunpack.c.l.s4 269488144
        %v1063 = vunpack.c.0.s8 %v1062
        %v1064 = vlaneseq
        %v1065 = vshrl.u32 %v1064, 7
        %v1066 = vsub.s32 %v1063, %v1065
        %v1067 = vrot.slane %v1059, %v1066
        %1068 = vset.pattern.permute.xlu0 2
        %1069 = vperm.xlu0 %1068, %v720
        %v1070 = vpop.permute.xlu0 %1069
        %v1073 = vunpack.c.l.s4 269488144
        %v1074 = vunpack.c.0.s8 %v1073
        %v1075 = vlaneseq
        %v1076 = vshrl.u32 %v1075, 7
        %v1077 = vsub.s32 %v1074, %v1076
        %v1078 = vrot.slane %v1070, %v1077
        %1079 = vset.pattern.permute.xlu0 2
        %1080 = vperm.xlu0 %1079, %v722
        %v1081 = vpop.permute.xlu0 %1080
        %v1084 = vunpack.c.l.s4 269488144
        %v1085 = vunpack.c.0.s8 %v1084
        %v1086 = vlaneseq
        %v1087 = vshrl.u32 %v1086, 7
        %v1088 = vsub.s32 %v1085, %v1087
        %v1089 = vrot.slane %v1081, %v1088
        %1090 = vset.pattern.permute.xlu0 2
        %1091 = vperm.xlu0 %1090, %v724
        %v1092 = vpop.permute.xlu0 %1091
        %v1095 = vunpack.c.l.s4 269488144
        %v1096 = vunpack.c.0.s8 %v1095
        %v1097 = vlaneseq
        %v1098 = vshrl.u32 %v1097, 7
        %v1099 = vsub.s32 %v1096, %v1098
        %v1100 = vrot.slane %v1092, %v1099
        %1101 = vset.pattern.permute.xlu0 2
        %1102 = vperm.xlu0 %1101, %v726
        %v1103 = vpop.permute.xlu0 %1102
        %v1106 = vunpack.c.l.s4 269488144
        %v1107 = vunpack.c.0.s8 %v1106
        %v1108 = vlaneseq
        %v1109 = vshrl.u32 %v1108, 7
        %v1110 = vsub.s32 %v1107, %v1109
        %v1111 = vrot.slane %v1103, %v1110
        %1112 = vset.pattern.permute.xlu0 2
        %1113 = vperm.xlu0 %1112, %v728
        %v1114 = vpop.permute.xlu0 %1113
        %v1117 = vunpack.c.l.s4 269488144
        %v1118 = vunpack.c.0.s8 %v1117
        %v1119 = vlaneseq
        %v1120 = vshrl.u32 %v1119, 7
        %v1121 = vsub.s32 %v1118, %v1120
        %v1122 = vrot.slane %v1114, %v1121
        %1123 = vset.pattern.permute.xlu0 2
        %1124 = vperm.xlu0 %1123, %v730
        %v1125 = vpop.permute.xlu0 %1124
        %v1128 = vunpack.c.l.s4 269488144
        %v1129 = vunpack.c.0.s8 %v1128
        %v1130 = vlaneseq
        %v1131 = vshrl.u32 %v1130, 7
        %v1132 = vsub.s32 %v1129, %v1131
        %v1133 = vrot.slane %v1125, %v1132
        %1134 = vrot.lane.b32.xlu0 %v875, 64
        %v1135 = vpop.permute.xlu0 %1134
        %1136 = vrot.lane.b32.xlu0 %v883, 64
        %v1137 = vpop.permute.xlu0 %1136
        %1138 = vrot.lane.b32.xlu0 %v882, 64
        %v1139 = vpop.permute.xlu0 %1138
        %1140 = vrot.lane.b32.xlu0 %v884, 64
        %v1141 = vpop.permute.xlu0 %1140
        %1142 = vrot.lane.b32.xlu0 %v892, 64
        %v1143 = vpop.permute.xlu0 %1142
        %1144 = vrot.lane.b32.xlu0 %v900, 64
        %v1145 = vpop.permute.xlu0 %1144
        %1146 = vrot.lane.b32.xlu0 %v899, 64
        %v1147 = vpop.permute.xlu0 %1146
        %1148 = vrot.lane.b32.xlu0 %v901, 64
        %v1149 = vpop.permute.xlu0 %1148
        %v1158 = vmul.f32 %v1056, %v1135
        %v1159 = vmul.f32 %v1067, %v1137
        %v1160 = vmul.f32 %v1078, %v1139
        %v1161 = vmul.f32 %v1089, %v1141
        %v1162 = vmul.f32 %v1100, %v1143
        %v1163 = vmul.f32 %v1111, %v1145
        %v1164 = vmul.f32 %v1122, %v1147
        %v1165 = vmul.f32 %v1133, %v1149
        %v1166 = vadd.f32 %v1038, %v1158
        %v1167 = vadd.f32 %v1039, %v1159
        %v1168 = vadd.f32 %v1040, %v1160
        %v1169 = vadd.f32 %v1041, %v1161
        %v1170 = vadd.f32 %v1042, %v1162
        %v1171 = vadd.f32 %v1043, %v1163
        %v1172 = vadd.f32 %v1044, %v1164
        %v1173 = vadd.f32 %v1045, %v1165
        %1174 = vset.pattern.permute.xlu0 3
        %1175 = vperm.xlu0 %1174, %v716
        %v1176 = vpop.permute.xlu0 %1175
        %v1179 = vunpack.c.l.s4 269488144
        %v1180 = vunpack.c.0.s8 %v1179
        %v1181 = vlaneseq
        %v1182 = vshrl.u32 %v1181, 7
        %v1183 = vsub.s32 %v1180, %v1182
        %v1184 = vrot.slane %v1176, %v1183
        %1185 = vset.pattern.permute.xlu0 3
        %1186 = vperm.xlu0 %1185, %v718
        %v1187 = vpop.permute.xlu0 %1186
        %v1190 = vunpack.c.l.s4 269488144
        %v1191 = vunpack.c.0.s8 %v1190
        %v1192 = vlaneseq
        %v1193 = vshrl.u32 %v1192, 7
        %v1194 = vsub.s32 %v1191, %v1193
        %v1195 = vrot.slane %v1187, %v1194
        %1196 = vset.pattern.permute.xlu0 3
        %1197 = vperm.xlu0 %1196, %v720
        %v1198 = vpop.permute.xlu0 %1197
        %v1201 = vunpack.c.l.s4 269488144
        %v1202 = vunpack.c.0.s8 %v1201
        %v1203 = vlaneseq
        %v1204 = vshrl.u32 %v1203, 7
        %v1205 = vsub.s32 %v1202, %v1204
        %v1206 = vrot.slane %v1198, %v1205
        %1207 = vset.pattern.permute.xlu0 3
        %1208 = vperm.xlu0 %1207, %v722
        %v1209 = vpop.permute.xlu0 %1208
        %v1212 = vunpack.c.l.s4 269488144
        %v1213 = vunpack.c.0.s8 %v1212
        %v1214 = vlaneseq
        %v1215 = vshrl.u32 %v1214, 7
        %v1216 = vsub.s32 %v1213, %v1215
        %v1217 = vrot.slane %v1209, %v1216
        %1218 = vset.pattern.permute.xlu0 3
        %1219 = vperm.xlu0 %1218, %v724
        %v1220 = vpop.permute.xlu0 %1219
        %v1223 = vunpack.c.l.s4 269488144
        %v1224 = vunpack.c.0.s8 %v1223
        %v1225 = vlaneseq
        %v1226 = vshrl.u32 %v1225, 7
        %v1227 = vsub.s32 %v1224, %v1226
        %v1228 = vrot.slane %v1220, %v1227
        %1229 = vset.pattern.permute.xlu0 3
        %1230 = vperm.xlu0 %1229, %v726
        %v1231 = vpop.permute.xlu0 %1230
        %v1234 = vunpack.c.l.s4 269488144
        %v1235 = vunpack.c.0.s8 %v1234
        %v1236 = vlaneseq
        %v1237 = vshrl.u32 %v1236, 7
        %v1238 = vsub.s32 %v1235, %v1237
        %v1239 = vrot.slane %v1231, %v1238
        %1240 = vset.pattern.permute.xlu0 3
        %1241 = vperm.xlu0 %1240, %v728
        %v1242 = vpop.permute.xlu0 %1241
        %v1245 = vunpack.c.l.s4 269488144
        %v1246 = vunpack.c.0.s8 %v1245
        %v1247 = vlaneseq
        %v1248 = vshrl.u32 %v1247, 7
        %v1249 = vsub.s32 %v1246, %v1248
        %v1250 = vrot.slane %v1242, %v1249
        %1251 = vset.pattern.permute.xlu0 3
        %1252 = vperm.xlu0 %1251, %v730
        %v1253 = vpop.permute.xlu0 %1252
        %v1256 = vunpack.c.l.s4 269488144
        %v1257 = vunpack.c.0.s8 %v1256
        %v1258 = vlaneseq
        %v1259 = vshrl.u32 %v1258, 7
        %v1260 = vsub.s32 %v1257, %v1259
        %v1261 = vrot.slane %v1253, %v1260
        %1262 = vrot.lane.b32.xlu0 %v875, 32
        %v1263 = vpop.permute.xlu0 %1262
        %1264 = vrot.lane.b32.xlu0 %v883, 32
        %v1265 = vpop.permute.xlu0 %1264
        %1266 = vrot.lane.b32.xlu0 %v882, 32
        %v1267 = vpop.permute.xlu0 %1266
        %1268 = vrot.lane.b32.xlu0 %v884, 32
        %v1269 = vpop.permute.xlu0 %1268
        %1270 = vrot.lane.b32.xlu0 %v892, 32
        %v1271 = vpop.permute.xlu0 %1270
        %1272 = vrot.lane.b32.xlu0 %v900, 32
        %v1273 = vpop.permute.xlu0 %1272
        %1274 = vrot.lane.b32.xlu0 %v899, 32
        %v1275 = vpop.permute.xlu0 %1274
        %1276 = vrot.lane.b32.xlu0 %v901, 32
        %v1277 = vpop.permute.xlu0 %1276
        %v1286 = vmul.f32 %v1184, %v1263
        %v1287 = vmul.f32 %v1195, %v1265
        %v1288 = vmul.f32 %v1206, %v1267
        %v1289 = vmul.f32 %v1217, %v1269
        %v1290 = vmul.f32 %v1228, %v1271
        %v1291 = vmul.f32 %v1239, %v1273
        %v1292 = vmul.f32 %v1250, %v1275
        %v1293 = vmul.f32 %v1261, %v1277
        %v1294 = vadd.f32 %v1166, %v1286
        %v1295 = vadd.f32 %v1167, %v1287
        %v1296 = vadd.f32 %v1168, %v1288
        %v1297 = vadd.f32 %v1169, %v1289
        %v1298 = vadd.f32 %v1170, %v1290
        %v1299 = vadd.f32 %v1171, %v1291
        %v1300 = vadd.f32 %v1172, %v1292
        %v1301 = vadd.f32 %v1173, %v1293
        %vm1302 = vcmask 254976
        %v1303 = vsel %vm1302, %v1294, 0.0
        %v1304 = vrot.slane %v1303, 4
        %v1305 = vadd.f32 %v1303, %v1304
        %v1306 = vrot.slane %v1305, 2
        %v1307 = vadd.f32 %v1305, %v1306
        %v1308 = vrot.slane %v1307, 1
        %v1309 = vadd.f32 %v1307, %v1308
        %v1310 = vsel %vm1302, %v1295, 0.0
        %v1311 = vrot.slane %v1310, 4
        %v1312 = vadd.f32 %v1310, %v1311
        %v1313 = vrot.slane %v1312, 2
        %v1314 = vadd.f32 %v1312, %v1313
        %v1315 = vrot.slane %v1314, 1
        %v1316 = vadd.f32 %v1314, %v1315
        %v1317 = vsel %vm1302, %v1296, 0.0
        %v1318 = vrot.slane %v1317, 4
        %v1319 = vadd.f32 %v1317, %v1318
        %v1320 = vrot.slane %v1319, 2
        %v1321 = vadd.f32 %v1319, %v1320
        %v1322 = vrot.slane %v1321, 1
        %v1323 = vadd.f32 %v1321, %v1322
        %v1324 = vsel %vm1302, %v1297, 0.0
        %v1325 = vrot.slane %v1324, 4
        %v1326 = vadd.f32 %v1324, %v1325
        %v1327 = vrot.slane %v1326, 2
        %v1328 = vadd.f32 %v1326, %v1327
        %v1329 = vrot.slane %v1328, 1
        %v1330 = vadd.f32 %v1328, %v1329
        %v1331 = vsel %vm1302, %v1298, 0.0
        %v1332 = vrot.slane %v1331, 4
        %v1333 = vadd.f32 %v1331, %v1332
        %v1334 = vrot.slane %v1333, 2
        %v1335 = vadd.f32 %v1333, %v1334
        %v1336 = vrot.slane %v1335, 1
        %v1337 = vadd.f32 %v1335, %v1336
        %v1338 = vsel %vm1302, %v1299, 0.0
        %v1339 = vrot.slane %v1338, 4
        %v1340 = vadd.f32 %v1338, %v1339
        %v1341 = vrot.slane %v1340, 2
        %v1342 = vadd.f32 %v1340, %v1341
        %v1343 = vrot.slane %v1342, 1
        %v1344 = vadd.f32 %v1342, %v1343
        %v1345 = vsel %vm1302, %v1300, 0.0
        %v1346 = vrot.slane %v1345, 4
        %v1347 = vadd.f32 %v1345, %v1346
        %v1348 = vrot.slane %v1347, 2
        %v1349 = vadd.f32 %v1347, %v1348
        %v1350 = vrot.slane %v1349, 1
        %v1351 = vadd.f32 %v1349, %v1350
        %v1352 = vsel %vm1302, %v1301, 0.0
        %v1353 = vrot.slane %v1352, 4
        %v1354 = vadd.f32 %v1352, %v1353
        %v1355 = vrot.slane %v1354, 2
        %v1356 = vadd.f32 %v1354, %v1355
        %v1357 = vrot.slane %v1356, 1
        %v1358 = vadd.f32 %v1356, %v1357
        %vm1367 = vcmask 1041409
        %v1368 = vsel %vm1367, %v1316, %v1309
        %vm1369 = vcmask 1042434
        %v1370 = vsel %vm1369, %v1323, %v1368
        %vm1371 = vcmask 1043459
        %v1372 = vsel %vm1371, %v1330, %v1370
        %vm1373 = vcmask 1044484
        %v1374 = vsel %vm1373, %v1337, %v1372
        %vm1375 = vcmask 1045509
        %v1376 = vsel %vm1375, %v1344, %v1374
        %vm1377 = vcmask 1046534
        %v1378 = vsel %vm1377, %v1351, %v1376
        %vm1379 = vcmask 1047559
        %v1380 = vsel %vm1379, %v1358, %v1378
        %vm1382 = vcmask 261120
        %1383 = vst.msk [vmem:[%s219] sm:$0xff] %vm1382, %v1380
        %s1384 = sand.u32 %s117, 1
        %s1385 = scalar_lea.sflag [#allocation3], %s1384
        %s1386 = sand.u32 %s117, 1
        %s1387 = smul.addr %s1386, 8
        %s1388 = scalar_lea.vmem [#allocation2], %s1387
        %s1389 = smul.u32 2, %s20
        %p1390 = scmp.lt.s32.totalorder %s1389, 3
        %s1391 = scalar_select %p1390, %s1389, 3
        %s1392 = smul.addr %s1391, 8
        %s1393 = scalar_lea.vmem %s5, %s1392
        // Predicated region
        $region37: #{self_attention.1} parent=35 // pred_check
          %p1394 = pneg %p127
        $region38: #{self_attention.1} parent=35 // pred_check_branch
          %1396 = sbr.rel (%p1394) target = $region40
        $region39: #{self_attention.1} parent=35 // pred_region
          %s1398 = ssub.s32 128, 128
          %1399 = vsyncadd %s1385, %s1398
          %s1400 = smul.addr %s20, 128
          %s1401 = scalar_lea.hbm %s4, %s1400
          %s1403 = sshll.u32 %s1388, 4
          %s1404 = int_to_ptr.vmem [resolvable:$true] %s1403
          %1406 = dma.vmem_to_hbm [thread:$0]  %s1404, 128, %s1401, %s1385
        $region40: #{self_attention.1} parent=35 // pred_fallthru
          _
        // Predicated region
        $region41: #{self_attention.1} parent=35 // pred_check
          %p1407 = pneg %p153
        $region42: #{self_attention.1} parent=35 // pred_check_branch
          %1409 = sbr.rel (%p1407) target = $region44
        $region43: #{self_attention.1} parent=35 // pred_region
          %s1410 = smul.u32 2, %s20
        $region44: #{self_attention.1} parent=35 // pred_fallthru
          _
      $region36: #{self_attention.1} parent=5 // pred_fallthru
        _
      %p1411 = scmp.le.s32.totalorder 2, %s15
      // Predicated region
      $region45: #{self_attention.1} parent=5 // pred_check
        %p1412 = pneg %p1411
      $region46: #{self_attention.1} parent=5 // pred_check_branch
        %1414 = sbr.rel (%p1412) target = $region48
      $region47: #{self_attention.1} parent=5 // pred_region
        %s1415 = ssub.s32 %s15, 2
        // Predicated region
        $region49: #{self_attention.1} parent=47 // pred_check
          %p1416 = pneg %p133
        $region50: #{self_attention.1} parent=47 // pred_check_branch
          %1418 = sbr.rel (%p1416) target = $region52
        $region51: #{self_attention.1} parent=47 // pred_region
          %s1419 = sand.u32 %s118, 1
          %s1420 = scalar_lea.sflag [#allocation3], %s1419
          %s1421 = sand.u32 %s118, 1
          %s1422 = smul.addr %s1421, 8
          %s1423 = scalar_lea.vmem [#allocation2], %s1422
          %1424 = dma.done %s1420, 128
        $region52: #{self_attention.1} parent=47 // pred_fallthru
          _
        // Predicated region
        $region53: #{self_attention.1} parent=47 // pred_check
          %p1425 = pneg %p159
        $region54: #{self_attention.1} parent=47 // pred_check_branch
          %1427 = sbr.rel (%p1425) target = $region56
        $region55: #{self_attention.1} parent=47 // pred_region
          %s1428 = smul.u32 2, %s21
          %p1429 = scmp.lt.s32.totalorder %s1428, 3
          %s1430 = scalar_select %p1429, %s1428, 3
          %s1431 = smul.addr %s1430, 8
          %s1432 = scalar_lea.vmem %s5, %s1431
        $region56: #{self_attention.1} parent=47 // pred_fallthru
          _
      $region48: #{self_attention.1} parent=5 // pred_fallthru
        _
    $region6: #{self_attention.1} parent=1 // loop_footer
      %s19 = sadd.s32 1, %s15
    $region7: #{self_attention.1} parent=1 // loop_footer_branch
      %14 = sbr.rel target = $region3
    $region8: #{self_attention.1} parent=1 // loop_exit
      _
    %1433 = vsyncpa [#allocation3], 1
    %s1434 = scalar_lea.sflag [#allocation3], 1
    %1435 = vsyncpa %s1434, 1

</llo_original>
